<compile_context>
chip_gen: v5e
topology: v5e:2x2
jax: 0.10.0
libtpu: 0.0.40
codegen_flags: <defaults>
</compile_context>

<pallas_src>
import functools

import jax
import jax.numpy as jnp
from jax.experimental import pallas as pl
from jax.experimental.pallas import tpu as pltpu


def _pft_kernel(*refs, finetune_factor, inv_temperature, use_uncertainty):
    if use_uncertainty:
        (text_ref, image_ref, w1_ref, b1_ref, w2r_ref, b2_ref, basew_ref,
         text_out_ref, image_out_ref, probs_out_ref) = refs
    else:
        (text_ref, image_ref, basew_ref,
         text_out_ref, image_out_ref, probs_out_ref) = refs

    text = text_ref[...]                       # [TB, H] native dtype (f32 or bf16)
    image = image_ref[...]
    text32 = text.astype(jnp.float32)
    image32 = image.astype(jnp.float32)

    # ---- scaled feature outputs -------------------------------------------------------
    # mean_j softmax(x)_j == 1/T  =>  finetune_factor is a constant; emit the two large
    # output tiles immediately so their stores overlap the MLP/similarity compute.
    text_out_ref[...] = (text32 * finetune_factor).astype(text_out_ref.dtype)
    image_out_ref[...] = (image32 * finetune_factor).astype(image_out_ref.dtype)

    # ---- cosine similarity (fused single pass, eps-clamped like F.cosine_similarity) --
    eps2 = 1e-16                                              # (1e-8)**2 clamp on the norms
    dot = jnp.sum(text32 * image32, axis=-1, keepdims=True)   # [TB, 1]
    tn2 = jnp.sum(text32 * text32, axis=-1, keepdims=True)
    im2 = jnp.sum(image32 * image32, axis=-1, keepdims=True)
    denom = jnp.maximum(tn2, eps2) * jnp.maximum(im2, eps2)
    sim_factor = dot * jax.lax.rsqrt(denom) * inv_temperature  # similarity / temperature

    # ---- task logits ------------------------------------------------------------------
    task_logits = basew_ref[...] * sim_factor                  # [TB, T]

    if use_uncertainty:
        # uncertainty_estimator: Linear(H,256) -> ReLU -> Dropout(id) -> Linear(256,1) -> Sigmoid
        combined = text + image                                # feature dtype (bf16 MXU-native)
        h = jnp.dot(combined, w1_ref[...],
                    preferred_element_type=jnp.float32) + b1_ref[...]
        h = jnp.maximum(h, 0.0)                                # ReLU
        # N=1 projection as broadcast-mul + lane reduction (VPU/XLU, MXU stays free)
        u_logit = jnp.sum(h * w2r_ref[...], axis=-1, keepdims=True) + b2_ref[...]
        # numerically stable sigmoid via tanh (EUP slot)
        uncertainty = 0.5 * (jnp.tanh(0.5 * u_logit) + 1.0)    # [TB, 1]
        task_logits = task_logits * (1.0 - uncertainty)

    # ---- softmax over task dim (max-subtracted: safe for any temperature, cheap at T) --
    z = task_logits - jnp.max(task_logits, axis=-1, keepdims=True)
    pe = jnp.exp(z)
    probs_out_ref[...] = (pe / jnp.sum(pe, axis=-1, keepdims=True)).astype(probs_out_ref.dtype)


def _round_up(x, m):
    return -(-x // m) * m


def _vmem_cap_bytes():
    """Per-generation scoped-VMEM cap (safe fallback if detection fails)."""
    try:
        kind = jax.devices()[0].device_kind.lower()
    except Exception:  # pragma: no cover
        return 48 << 20
    if "v7" in kind or "tpu7" in kind:
        return 48 << 20            # 64 MiB physical VMEM per TensorCore
    if any(t in kind for t in ("v4", "v5", "v6")):
        return 96 << 20            # 128 MiB physical VMEM
    return 48 << 20                # unknown: conservative


def probabilistic_finetuning_forward(text_features, image_features, params,
                                     *, finetune_lambda=0.1, temperature=0.07,
                                     use_uncertainty=True, batch_tile=2048,
                                     donate_features=False):
    B, H = text_features.shape
    T = params["task_weights"].shape[-1]
    M = params["w1"].shape[-1] if use_uncertainty else 0
    feat_dtype = text_features.dtype
    feat_bytes = jnp.dtype(feat_dtype).itemsize

    # Hoisted constants (mathematically identical to the PyTorch reference).
    finetune_factor = 1.0 + finetune_lambda / T
    inv_temperature = 1.0 / temperature
    base_w = jax.nn.softmax(
        params["task_weights"].astype(jnp.float32).reshape(1, T), axis=-1)      # [1, T]

    if use_uncertainty:
        w1 = params["w1"].astype(feat_dtype)                                     # [H, M]
        b1 = params["b1"].astype(jnp.float32).reshape(1, M)                      # [1, M]
        w2_row = params["w2"].astype(jnp.float32).reshape(1, M)                  # [1, M]
        b2 = params["b2"].astype(jnp.float32).reshape(1, 1)                      # [1, 1]

    # ---- tile / VMEM budgeting ----------------------------------------------------------
    vmem_cap = _vmem_cap_bytes()

    def _tile_bytes(tb):
        streams = 4 * 2 * tb * H * feat_bytes                  # 2 in + 2 out, double-buffered
        probs = 2 * tb * max(_round_up(T, 128), 128) * 4       # lane-padded probs tiles
        weights = 2 * 8 * 128 * 4                              # base_w padding slack
        if use_uncertainty:
            weights += 2 * (H * _round_up(M, 128) * feat_bytes
                            + 3 * 8 * _round_up(M, 128) * 4)   # w1 + (b1, w2_row, b2) padded
        return streams + probs + weights + (1 << 20)           # + internal scratch slack

    if B < 16:
        # Tiny batch: single full-extent block (always layout-legal; per-core split
        # isn't worth the per-step overhead).
        tb = B
    else:
        tb = min(batch_tile, _round_up(B, 8))
        # Guarantee >= 2 grid steps so dimension_semantics=("parallel",) can shard
        # tiles across v7x's two TensorCores (harmless on single-TC v5e/v6e).
        tb = min(tb, _round_up(pl.cdiv(B, 2), 8))
        # Shrink until the double-buffered working set fits the per-generation budget.
        while tb > 8 and _tile_bytes(tb) > vmem_cap:
            tb = max(8, _round_up(tb // 2, 8))

    grid = (pl.cdiv(B, tb),)
    vmem_limit = int(min(vmem_cap, max(32 << 20, _tile_bytes(tb) + (4 << 20))))

    # ---- specs ---------------------------------------------------------------------------
    def row_spec(shape):
        return pl.BlockSpec(shape, lambda i: (i, 0))

    def const_spec(shape):
        return pl.BlockSpec(shape, lambda i: (0, 0))   # same block every step -> stays resident

    if use_uncertainty:
        in_specs = [
            row_spec((tb, H)),        # text
            row_spec((tb, H)),        # image
            const_spec((H, M)),       # w1
            const_spec((1, M)),       # b1
            const_spec((1, M)),       # w2 (row form)
            const_spec((1, 1)),       # b2
            const_spec((1, T)),       # softmax(task_weights)
        ]
        operands = (text_features, image_features, w1, b1, w2_row, b2, base_w)
    else:
        in_specs = [
            row_spec((tb, H)),        # text
            row_spec((tb, H)),        # image
            const_spec((1, T)),       # softmax(task_weights)
        ]
        operands = (text_features, image_features, base_w)

    kernel = functools.partial(
        _pft_kernel,
        finetune_factor=finetune_factor,
        inv_temperature=inv_temperature,
        use_uncertainty=use_uncertainty,
    )

    out = pl.pallas_call(
        kernel,
        grid=grid,
        in_specs=in_specs,
        out_specs=[
            row_spec((tb, H)),
            row_spec((tb, H)),
            row_spec((tb, T)),
        ],
        out_shape=[
            jax.ShapeDtypeStruct((B, H), text_features.dtype),
            jax.ShapeDtypeStruct((B, H), image_features.dtype),
            jax.ShapeDtypeStruct((B, T), jnp.float32),
        ],
        input_output_aliases=({0: 0, 1: 1} if donate_features else {}),
        compiler_params=pltpu.CompilerParams(
            dimension_semantics=("parallel",),
            vmem_limit_bytes=vmem_limit,
        ),
    )(*operands)
    return out


def _reference(text, image, params, *, finetune_lambda=0.1, temperature=0.07,
               use_uncertainty=True):
    base_w = jax.nn.softmax(params["task_weights"].astype(jnp.float32), axis=-1)
    eps = 1e-8
    dot = jnp.sum(text * image, axis=-1, keepdims=True)
    tn = jnp.maximum(jnp.linalg.norm(text, axis=-1, keepdims=True), eps)
    im = jnp.maximum(jnp.linalg.norm(image, axis=-1, keepdims=True), eps)
    sim = dot / (tn * im)
    logits = base_w * (sim / temperature)
    if use_uncertainty:
        combined = text + image
        h = jnp.maximum(combined @ params["w1"] + params["b1"], 0.0)
        uncertainty = jax.nn.sigmoid(h @ params["w2"] + params["b2"])
        logits = logits * (1.0 - uncertainty)
    probs = jax.nn.softmax(logits, axis=-1)
    factor = 1.0 + finetune_lambda * jnp.mean(probs, axis=-1, keepdims=True)
    return text * factor, image * factor, probs


if __name__ == "__main__":
    key = jax.random.PRNGKey(0)
    B, H, M, T = 16, 512, 256, 4   # batch, hidden_size (module default 512), MLP hidden, num_tasks

    k1, k2, k3, k4 = jax.random.split(key, 4)
    text_features = jax.random.normal(k1, (B, H), dtype=jnp.float32)
    image_features = jax.random.normal(k2, (B, H), dtype=jnp.float32)

    params = {
        # uncertainty_estimator: Linear(H, 256) -> ReLU -> Dropout -> Linear(256, 1) -> Sigmoid
        "w1": jax.random.normal(k3, (H, M), dtype=jnp.float32) * 0.02,
        "b1": jnp.zeros((M,), dtype=jnp.float32),
        "w2": jax.random.normal(k4, (M, 1), dtype=jnp.float32) * 0.02,
        "b2": jnp.zeros((1,), dtype=jnp.float32),
        # nn.Parameter(torch.ones(num_tasks) / num_tasks)
        "task_weights": jnp.ones((T,), dtype=jnp.float32) / T,
    }

    # --- f32, uncertainty on: B=16 triggers the grid>=2 (two-TensorCore) tiling path ---
    t1, i1, p1 = probabilistic_finetuning_forward(text_features, image_features, params)
    jax.block_until_ready((t1, i1, p1))
    rt, ri, rp = _reference(text_features, image_features, params, use_uncertainty=True)
    assert jnp.allclose(t1, rt, atol=1e-5, rtol=1e-5)
    assert jnp.allclose(i1, ri, atol=1e-5, rtol=1e-5)
    assert jnp.allclose(p1, rp, atol=1e-5, rtol=1e-5)

    # --- uncertainty disabled: MLP weights never enter the kernel operand list ---
    t2, i2, p2 = probabilistic_finetuning_forward(
        text_features, image_features, params, use_uncertainty=False)
    jax.block_until_ready((t2, i2, p2))
    rt2, ri2, rp2 = _reference(text_features, image_features, params, use_uncertainty=False)
    assert jnp.allclose(t2, rt2, atol=1e-5, rtol=1e-5)
    assert jnp.allclose(i2, ri2, atol=1e-5, rtol=1e-5)
    assert jnp.allclose(p2, rp2, atol=1e-5, rtol=1e-5)

    # --- bf16 feature streams (halved HBM traffic); loose tolerance vs f32 reference ---
    t_bf = text_features.astype(jnp.bfloat16)
    i_bf = image_features.astype(jnp.bfloat16)
    t3, i3, p3 = probabilistic_finetuning_forward(t_bf, i_bf, params)
    jax.block_until_ready((t3, i3, p3))
    rt3, ri3, rp3 = _reference(t_bf.astype(jnp.float32), i_bf.astype(jnp.float32),
                               params, use_uncertainty=True)
    assert jnp.allclose(t3.astype(jnp.float32), rt3, atol=5e-2, rtol=5e-2)
    assert jnp.allclose(i3.astype(jnp.float32), ri3, atol=5e-2, rtol=5e-2)
    assert jnp.allclose(p3, rp3, atol=2e-2, rtol=2e-2)

    print("KERNEL_OK")
</pallas_src>

<mosaic_0001>
module attributes {stable_mosaic.version = 11 : i64} {
  func.func @_pft_kernel(%arg0: i32, %arg1: memref<8x512xf32, #tpu.memory_space<vmem>>, %arg2: memref<8x512xf32, #tpu.memory_space<vmem>>, %arg3: memref<512x256xf32, #tpu.memory_space<vmem>>, %arg4: memref<1x256xf32, #tpu.memory_space<vmem>>, %arg5: memref<1x256xf32, #tpu.memory_space<vmem>>, %arg6: memref<1x1xf32, #tpu.memory_space<vmem>>, %arg7: memref<1x4xf32, #tpu.memory_space<vmem>>, %arg8: memref<8x512xf32, #tpu.memory_space<vmem>>, %arg9: memref<8x512xf32, #tpu.memory_space<vmem>>, %arg10: memref<8x4xf32, #tpu.memory_space<vmem>>) attributes {dimension_semantics = [#tpu.dimension_semantics<parallel>], iteration_bounds = array<i64: 2>, scalar_prefetch = 0 : i64, scratch_operands = 0 : i64, tpu.core_type = #tpu.core_type<tc>, window_params = [{transform_indices = @transform_0, window_bounds = array<i64: 8, 512>}, {transform_indices = @transform_1, window_bounds = array<i64: 8, 512>}, {pipeline_mode = #tpu.pipeline_mode<synchronous>, transform_indices = @transform_2, window_bounds = array<i64: 512, 256>}, {pipeline_mode = #tpu.pipeline_mode<synchronous>, transform_indices = @transform_3, window_bounds = array<i64: 1, 256>}, {pipeline_mode = #tpu.pipeline_mode<synchronous>, transform_indices = @transform_4, window_bounds = array<i64: 1, 256>}, {pipeline_mode = #tpu.pipeline_mode<synchronous>, transform_indices = @transform_5, window_bounds = array<i64: 1, 1>}, {pipeline_mode = #tpu.pipeline_mode<synchronous>, transform_indices = @transform_6, window_bounds = array<i64: 1, 4>}, {transform_indices = @transform_7, window_bounds = array<i64: 8, 512>}, {transform_indices = @transform_8, window_bounds = array<i64: 8, 512>}, {transform_indices = @transform_9, window_bounds = array<i64: 8, 4>}]} {
    %c0 = arith.constant 0 : index
    %c0_0 = arith.constant 0 : index
    %0 = vector.load %arg1[%c0, %c0_0] : memref<8x512xf32, #tpu.memory_space<vmem>>, vector<8x512xf32>
    %c0_1 = arith.constant 0 : index
    %c0_2 = arith.constant 0 : index
    %1 = vector.load %arg2[%c0_1, %c0_2] : memref<8x512xf32, #tpu.memory_space<vmem>>, vector<8x512xf32>
    %cst = arith.constant 1.025000e+00 : f32
    %2 = vector.broadcast %cst : f32 to vector<8x512xf32>
    %3 = arith.mulf %0, %2 : vector<8x512xf32>
    %c0_3 = arith.constant 0 : index
    %c0_4 = arith.constant 0 : index
    %4 = vector.load %arg8[%c0_3, %c0_4] : memref<8x512xf32, #tpu.memory_space<vmem>>, vector<8x512xf32>
    tpu.vector_store %arg8[%c0_3, %c0_4], %3 {strides = array<i32>} : memref<8x512xf32, #tpu.memory_space<vmem>>, vector<8x512xf32>,
    %cst_5 = arith.constant 1.025000e+00 : f32
    %5 = vector.broadcast %cst_5 : f32 to vector<8x512xf32>
    %6 = arith.mulf %1, %5 : vector<8x512xf32>
    %c0_6 = arith.constant 0 : index
    %c0_7 = arith.constant 0 : index
    %7 = vector.load %arg9[%c0_6, %c0_7] : memref<8x512xf32, #tpu.memory_space<vmem>>, vector<8x512xf32>
    tpu.vector_store %arg9[%c0_6, %c0_7], %6 {strides = array<i32>} : memref<8x512xf32, #tpu.memory_space<vmem>>, vector<8x512xf32>,
    %8 = arith.mulf %0, %1 : vector<8x512xf32>
    %cst_8 = arith.constant dense<0.000000e+00> : vector<8xf32>
    %9 = vector.multi_reduction <add>, %8, %cst_8 [1] : vector<8x512xf32> to vector<8xf32>
    %10 = vector.shape_cast %9 : vector<8xf32> to vector<8x1xf32>
    %11 = arith.mulf %0, %0 : vector<8x512xf32>
    %cst_9 = arith.constant dense<0.000000e+00> : vector<8xf32>
    %12 = vector.multi_reduction <add>, %11, %cst_9 [1] : vector<8x512xf32> to vector<8xf32>
    %13 = vector.shape_cast %12 : vector<8xf32> to vector<8x1xf32>
    %14 = arith.mulf %1, %1 : vector<8x512xf32>
    %cst_10 = arith.constant dense<0.000000e+00> : vector<8xf32>
    %15 = vector.multi_reduction <add>, %14, %cst_10 [1] : vector<8x512xf32> to vector<8xf32>
    %16 = vector.shape_cast %15 : vector<8xf32> to vector<8x1xf32>
    %cst_11 = arith.constant 1.000000e-16 : f32
    %17 = vector.broadcast %cst_11 : f32 to vector<8x1xf32>
    %18 = arith.maximumf %13, %17 : vector<8x1xf32>
    %cst_12 = arith.constant 1.000000e-16 : f32
    %19 = vector.broadcast %cst_12 : f32 to vector<8x1xf32>
    %20 = arith.maximumf %16, %19 : vector<8x1xf32>
    %21 = arith.mulf %18, %20 : vector<8x1xf32>
    %22 = math.rsqrt %21 : vector<8x1xf32>
    %23 = arith.mulf %10, %22 : vector<8x1xf32>
    %cst_13 = arith.constant 14.2857141 : f32
    %24 = vector.broadcast %cst_13 : f32 to vector<8x1xf32>
    %25 = arith.mulf %23, %24 : vector<8x1xf32>
    %c0_14 = arith.constant 0 : index
    %c0_15 = arith.constant 0 : index
    %26 = vector.load %arg7[%c0_14, %c0_15] : memref<1x4xf32, #tpu.memory_space<vmem>>, vector<1x4xf32>
    %27 = vector.broadcast %26 : vector<1x4xf32> to vector<8x4xf32>
    %28 = vector.broadcast %25 : vector<8x1xf32> to vector<8x4xf32>
    %29 = arith.mulf %27, %28 : vector<8x4xf32>
    %30 = arith.addf %0, %1 : vector<8x512xf32>
    %c0_16 = arith.constant 0 : index
    %c0_17 = arith.constant 0 : index
    %31 = vector.load %arg3[%c0_16, %c0_17] : memref<512x256xf32, #tpu.memory_space<vmem>>, vector<512x256xf32>
    %cst_18 = arith.constant dense<0.000000e+00> : vector<8x256xf32>
    %32 = tpu.matmul %30, %31, %cst_18 {dimension_numbers = #tpu.dot_dimension_numbers<[1], [0], [0], [1], [0, 0, 1, 1], [], []>} : vector<8x512xf32>, vector<512x256xf32>, vector<8x256xf32> -> vector<8x256xf32>
    %c0_19 = arith.constant 0 : index
    %c0_20 = arith.constant 0 : index
    %33 = vector.load %arg4[%c0_19, %c0_20] : memref<1x256xf32, #tpu.memory_space<vmem>>, vector<1x256xf32>
    %34 = vector.broadcast %33 : vector<1x256xf32> to vector<8x256xf32>
    %35 = arith.addf %32, %34 : vector<8x256xf32>
    %cst_21 = arith.constant 0.000000e+00 : f32
    %36 = vector.broadcast %cst_21 : f32 to vector<8x256xf32>
    %37 = arith.maximumf %35, %36 : vector<8x256xf32>
    %c0_22 = arith.constant 0 : index
    %c0_23 = arith.constant 0 : index
    %38 = vector.load %arg5[%c0_22, %c0_23] : memref<1x256xf32, #tpu.memory_space<vmem>>, vector<1x256xf32>
    %39 = vector.broadcast %38 : vector<1x256xf32> to vector<8x256xf32>
    %40 = arith.mulf %37, %39 : vector<8x256xf32>
    %cst_24 = arith.constant dense<0.000000e+00> : vector<8xf32>
    %41 = vector.multi_reduction <add>, %40, %cst_24 [1] : vector<8x256xf32> to vector<8xf32>
    %42 = vector.shape_cast %41 : vector<8xf32> to vector<8x1xf32>
    %c0_25 = arith.constant 0 : index
    %c0_26 = arith.constant 0 : index
    %43 = vector.load %arg6[%c0_25, %c0_26] : memref<1x1xf32, #tpu.memory_space<vmem>>, vector<1x1xf32>
    %44 = vector.broadcast %43 : vector<1x1xf32> to vector<8x1xf32>
    %45 = arith.addf %42, %44 : vector<8x1xf32>
    %cst_27 = arith.constant 5.000000e-01 : f32
    %46 = vector.broadcast %cst_27 : f32 to vector<8x1xf32>
    %47 = arith.mulf %46, %45 : vector<8x1xf32>
    %48 = math.tanh %47 : vector<8x1xf32>
    %cst_28 = arith.constant 1.000000e+00 : f32
    %49 = vector.broadcast %cst_28 : f32 to vector<8x1xf32>
    %50 = arith.addf %48, %49 : vector<8x1xf32>
    %cst_29 = arith.constant 5.000000e-01 : f32
    %51 = vector.broadcast %cst_29 : f32 to vector<8x1xf32>
    %52 = arith.mulf %51, %50 : vector<8x1xf32>
    %cst_30 = arith.constant 1.000000e+00 : f32
    %53 = vector.broadcast %cst_30 : f32 to vector<8x1xf32>
    %54 = arith.subf %53, %52 : vector<8x1xf32>
    %55 = vector.broadcast %54 : vector<8x1xf32> to vector<8x4xf32>
    %56 = arith.mulf %29, %55 : vector<8x4xf32>
    %cst_31 = arith.constant dense<0xFF800000> : vector<8xf32>
    %57 = vector.multi_reduction <maximumf>, %56, %cst_31 [1] : vector<8x4xf32> to vector<8xf32>
    %58 = vector.shape_cast %57 : vector<8xf32> to vector<8x1xf32>
    %59 = vector.broadcast %58 : vector<8x1xf32> to vector<8x4xf32>
    %60 = arith.subf %56, %59 : vector<8x4xf32>
    %61 = math.exp %60 : vector<8x4xf32>
    %cst_32 = arith.constant dense<0.000000e+00> : vector<8xf32>
    %62 = vector.multi_reduction <add>, %61, %cst_32 [1] : vector<8x4xf32> to vector<8xf32>
    %63 = vector.shape_cast %62 : vector<8xf32> to vector<8x1xf32>
    %64 = vector.broadcast %63 : vector<8x1xf32> to vector<8x4xf32>
    %65 = arith.divf %61, %64 : vector<8x4xf32>
    %c0_33 = arith.constant 0 : index
    %c0_34 = arith.constant 0 : index
    %66 = vector.load %arg10[%c0_33, %c0_34] : memref<8x4xf32, #tpu.memory_space<vmem>>, vector<8x4xf32>
    tpu.vector_store %arg10[%c0_33, %c0_34], %65 {strides = array<i32>} : memref<8x4xf32, #tpu.memory_space<vmem>>, vector<8x4xf32>,
    return
  }
  func.func @transform_0(%arg0: i32) -> (i32, i32) {
    %c0_i32 = arith.constant 0 : i32
    %c0_i32_0 = arith.constant 0 : i32
    return %arg0, %c0_i32 : i32, i32
  }
  func.func @transform_1(%arg0: i32) -> (i32, i32) {
    %c0_i32 = arith.constant 0 : i32
    %c0_i32_0 = arith.constant 0 : i32
    return %arg0, %c0_i32 : i32, i32
  }
  func.func @transform_2(%arg0: i32) -> (i32, i32) {
    %c0_i32 = arith.constant 0 : i32
    %c0_i32_0 = arith.constant 0 : i32
    %c0_i32_1 = arith.constant 0 : i32
    return %c0_i32, %c0_i32_0 : i32, i32
  }
  func.func @transform_3(%arg0: i32) -> (i32, i32) {
    %c0_i32 = arith.constant 0 : i32
    %c0_i32_0 = arith.constant 0 : i32
    %c0_i32_1 = arith.constant 0 : i32
    return %c0_i32, %c0_i32_0 : i32, i32
  }
  func.func @transform_4(%arg0: i32) -> (i32, i32) {
    %c0_i32 = arith.constant 0 : i32
    %c0_i32_0 = arith.constant 0 : i32
    %c0_i32_1 = arith.constant 0 : i32
    return %c0_i32, %c0_i32_0 : i32, i32
  }
  func.func @transform_5(%arg0: i32) -> (i32, i32) {
    %c0_i32 = arith.constant 0 : i32
    %c0_i32_0 = arith.constant 0 : i32
    %c0_i32_1 = arith.constant 0 : i32
    return %c0_i32, %c0_i32_0 : i32, i32
  }
  func.func @transform_6(%arg0: i32) -> (i32, i32) {
    %c0_i32 = arith.constant 0 : i32
    %c0_i32_0 = arith.constant 0 : i32
    %c0_i32_1 = arith.constant 0 : i32
    return %c0_i32, %c0_i32_0 : i32, i32
  }
  func.func @transform_7(%arg0: i32) -> (i32, i32) {
    %c0_i32 = arith.constant 0 : i32
    %c0_i32_0 = arith.constant 0 : i32
    return %arg0, %c0_i32 : i32, i32
  }
  func.func @transform_8(%arg0: i32) -> (i32, i32) {
    %c0_i32 = arith.constant 0 : i32
    %c0_i32_0 = arith.constant 0 : i32
    return %arg0, %c0_i32 : i32, i32
  }
  func.func @transform_9(%arg0: i32) -> (i32, i32) {
    %c0_i32 = arith.constant 0 : i32
    %c0_i32_0 = arith.constant 0 : i32
    return %arg0, %c0_i32 : i32, i32
  }
}

</mosaic_0001>

<llo_original>
// kernel: tpu_custom_call.1
$region0: #{tpu_custom_call.1}
  #allocation0 [shape = 'u32[]', space=smem, size = 0x4, offset = 0x4, fixed_abs, tag = 'smem constant byte address 0x4 - core index']
  #allocation1 [shape = 'u32[72,128]{1,0:T(1,128)}', space=vmem, size = 0x9000, scoped, tag = 'internal scratch']
  #allocation2 [shape = 'f32[1,1]{1,0:T(1,128)S(1)}', space=vmem, size = 0x200, scoped, tag = 'scoped memory for tpu_custom_call.1']
  %s0 = inlined_call_operand.hbm [shape: f32[16,512], index: 0, kind: input, shape index: {}]
  %s1 = inlined_call_operand.hbm [shape: f32[16,512], index: 1, kind: input, shape index: {}]
  %s2 = inlined_call_operand.hbm [shape: f32[512,256], index: 2, kind: input, shape index: {}]
  %s3 = inlined_call_operand.vmem [shape: f32[1,256], index: 3, kind: input, shape index: {}]
  %s4 = inlined_call_operand.vmem [shape: f32[1,256], index: 4, kind: input, shape index: {}]
  %s5 = inlined_call_operand.<no memory space> [shape: f32[1,1], index: 5, kind: input, shape index: {}]
  %s6 = inlined_call_operand.vmem [shape: f32[1,4], index: 6, kind: input, shape index: {}]
  %s7 = inlined_call_operand.hbm [shape: f32[16,512], index: 7, kind: output, shape index: {0}]
  %s8 = inlined_call_operand.hbm [shape: f32[16,512], index: 8, kind: output, shape index: {1}]
  %s9 = inlined_call_operand.vmem [shape: f32[16,4], index: 9, kind: output, shape index: {2}]
  %10 = xla_tuple %s7, %s8, %s9
  %s11 = sld [smem:[#allocation0]]
  $region89: #{tpu_custom_call.1} parent=0
    _
  %s13 = ssub.s32 1, %s11
  %s14 = scalar_select 0, %s13, %s11
  %v15 = vstv %s5
  %16 = vst [vmem:[#allocation2] sm:$0x1] %v15
  $region1: #{tpu_custom_call.1} parent=0
    #allocation3 [shape = 'u8[32768]{0}', space=vmem, size = 0x8000, scoped, tag = 'input window, operand 0']
    #allocation4 [shape = 's32[2]{0}', space=sflag, size = 0x8, scoped, tag = 'scoped memory for tpu_custom_call.1']
    #allocation5 [shape = 's32[2]{0}', space=sflag, size = 0x8, scoped, tag = 'scoped memory for tpu_custom_call.1']
    #allocation6 [shape = 'u8[32768]{0}', space=vmem, size = 0x8000, scoped, tag = 'input window, operand 1']
    #allocation7 [shape = 's32[2]{0}', space=sflag, size = 0x8, scoped, tag = 'scoped memory for tpu_custom_call.1']
    #allocation8 [shape = 'u8[524288]{0}', space=vmem, size = 0x80000, scoped, tag = 'input window, operand 2, single buffered']
    #allocation9 [shape = 'u8[32768]{0}', space=vmem, size = 0x8000, scoped, tag = 'output window, operand 0']
    #allocation10 [shape = 'u8[32768]{0}', space=vmem, size = 0x8000, scoped, tag = 'output window, operand 1']
    #allocation11 [shape = 's32[2]{0}', space=sflag, size = 0x8, scoped, tag = 'scoped memory for tpu_custom_call.1']
    %17 = vsyncpa [#allocation4], 0
    %s18 = scalar_lea.sflag [#allocation4], 1
    %19 = vsyncpa %s18, 0
    %20 = vsyncpa [#allocation7], 0
    %s21 = scalar_lea.sflag [#allocation7], 1
    %22 = vsyncpa %s21, 0
    %23 = vsyncpa [#allocation5], 0
    %s24 = scalar_lea.sflag [#allocation5], 1
    %25 = vsyncpa %s24, 0
    %26 = vsyncpa [#allocation11], 0
    %s27 = scalar_lea.sflag [#allocation11], 1
    %28 = vsyncpa %s27, 0
    loop: start=0, step=1, limit=4
    $region2: #{tpu_custom_call.1} parent=1 // loop_pre_header
      _
    $region3: #{tpu_custom_call.1} parent=1 // loop_header
      %s30 = sphi 0, %s34
      %p31 = scmp.ge.s32.totalorder %s30, 4
      %s40 = sphi 0, %s42
      %s43 = sphi 0, %s40
      %s44 = sphi 0, %s43
      %s60 = sphi 0, %s44
      %s66 = sphi 0, %s68
      %s69 = sphi 0, %s66
      %s70 = sphi 0, %s69
      %s86 = sphi 0, %s70
      %s90 = sphi 0, %s90
      %s92 = sphi 0, %s90
      %s93 = sphi 0, %s92
      %s107 = sphi 0, %s93
      %s111 = sphi 0, %s111
      %s113 = sphi 0, %s111
      %s114 = sphi 0, %s113
      %s128 = sphi 0, %s114
      %s132 = sphi 0, %s132
      %s134 = sphi 0, %s132
      %s135 = sphi 0, %s134
      %s149 = sphi 0, %s135
      %s153 = sphi 0, %s153
      %s155 = sphi 0, %s153
      %s156 = sphi 0, %s155
      %s170 = sphi 0, %s156
      %s174 = sphi 0, %s174
      %s176 = sphi 0, %s174
      %s177 = sphi 0, %s176
      %s191 = sphi 0, %s177
      %s197 = sphi 0, %s199
      %s200 = sphi 0, %s197
      %s201 = sphi 0, %s200
      %s217 = sphi 0, %s201
      %s223 = sphi 0, %s225
      %s226 = sphi 0, %s223
      %s227 = sphi 0, %s226
      %s243 = sphi 0, %s227
      %s249 = sphi 0, %s251
      %s252 = sphi 0, %s249
      %s253 = sphi 0, %s252
      %s269 = sphi 0, %s253
    $region4: #{tpu_custom_call.1} parent=1 // loop_header_branch
      %33 = sbr.rel (%p31) target = $region8
    $region5: #{tpu_custom_call.1} parent=1 // loop_body
      %s35 = ssub.s32 %s30, 1
      %s36 = ssub.s32 %s30, 2
      %s37 = sadd.s32 %s30, 1
      %s38 = ssub.s32 %s30, %s37
      %p39 = scmp.eq.s32.totalorder %s38, 0
      %s41 = sadd.s32 %s40, 1
      %s42 = scalar_select %p39, %s40, %s41
      %p45 = pneg %p39
      %p46 = scmp.eq.s32.totalorder %s30, 1
      %p47 = por %p45, %p46
      %p48 = scmp.ne.s32.totalorder %s40, %s43
      %p49 = scmp.eq.s32.totalorder %s30, 0
      %p50 = por %p48, %p49
      %p51 = scmp.ne.s32.totalorder %s40, %s43
      %p52 = scmp.eq.s32.totalorder %s35, 1
      %p53 = por %p51, %p52
      %p54 = scmp.ne.s32.totalorder %s43, %s44
      %p55 = scmp.eq.s32.totalorder %s35, 0
      %p56 = por %p54, %p55
      %p57 = scmp.ne.s32.totalorder %s43, %s44
      %p58 = scmp.eq.s32.totalorder %s36, 1
      %p59 = por %p57, %p58
      %p61 = scmp.ne.s32.totalorder %s44, %s60
      %p62 = scmp.eq.s32.totalorder %s36, 0
      %p63 = por %p61, %p62
      %s64 = ssub.s32 %s30, %s37
      %p65 = scmp.eq.s32.totalorder %s64, 0
      %s67 = sadd.s32 %s66, 1
      %s68 = scalar_select %p65, %s66, %s67
      %p71 = pneg %p65
      %p72 = scmp.eq.s32.totalorder %s30, 1
      %p73 = por %p71, %p72
      %p74 = scmp.ne.s32.totalorder %s66, %s69
      %p75 = scmp.eq.s32.totalorder %s30, 0
      %p76 = por %p74, %p75
      %p77 = scmp.ne.s32.totalorder %s66, %s69
      %p78 = scmp.eq.s32.totalorder %s35, 1
      %p79 = por %p77, %p78
      %p80 = scmp.ne.s32.totalorder %s69, %s70
      %p81 = scmp.eq.s32.totalorder %s35, 0
      %p82 = por %p80, %p81
      %p83 = scmp.ne.s32.totalorder %s69, %s70
      %p84 = scmp.eq.s32.totalorder %s36, 1
      %p85 = por %p83, %p84
      %p87 = scmp.ne.s32.totalorder %s70, %s86
      %p88 = scmp.eq.s32.totalorder %s36, 0
      %p89 = por %p87, %p88
      %s91 = sadd.s32 %s90, 1
      %p94 = scmp.eq.s32.totalorder %s30, 1
      %p95 = scmp.ne.s32.totalorder %s90, %s92
      %p96 = scmp.eq.s32.totalorder %s30, 0
      %p97 = por %p95, %p96
      %p98 = scmp.ne.s32.totalorder %s90, %s92
      %p99 = scmp.eq.s32.totalorder %s35, 1
      %p100 = por %p98, %p99
      %p101 = scmp.ne.s32.totalorder %s92, %s93
      %p102 = scmp.eq.s32.totalorder %s35, 0
      %p103 = por %p101, %p102
      %p104 = scmp.ne.s32.totalorder %s92, %s93
      %p105 = scmp.eq.s32.totalorder %s36, 1
      %p106 = por %p104, %p105
      %p108 = scmp.ne.s32.totalorder %s93, %s107
      %p109 = scmp.eq.s32.totalorder %s36, 0
      %p110 = por %p108, %p109
      %s112 = sadd.s32 %s111, 1
      %p115 = scmp.eq.s32.totalorder %s30, 1
      %p116 = scmp.ne.s32.totalorder %s111, %s113
      %p117 = scmp.eq.s32.totalorder %s30, 0
      %p118 = por %p116, %p117
      %p119 = scmp.ne.s32.totalorder %s111, %s113
      %p120 = scmp.eq.s32.totalorder %s35, 1
      %p121 = por %p119, %p120
      %p122 = scmp.ne.s32.totalorder %s113, %s114
      %p123 = scmp.eq.s32.totalorder %s35, 0
      %p124 = por %p122, %p123
      %p125 = scmp.ne.s32.totalorder %s113, %s114
      %p126 = scmp.eq.s32.totalorder %s36, 1
      %p127 = por %p125, %p126
      %p129 = scmp.ne.s32.totalorder %s114, %s128
      %p130 = scmp.eq.s32.totalorder %s36, 0
      %p131 = por %p129, %p130
      %s133 = sadd.s32 %s132, 1
      %p136 = scmp.eq.s32.totalorder %s30, 1
      %p137 = scmp.ne.s32.totalorder %s132, %s134
      %p138 = scmp.eq.s32.totalorder %s30, 0
      %p139 = por %p137, %p138
      %p140 = scmp.ne.s32.totalorder %s132, %s134
      %p141 = scmp.eq.s32.totalorder %s35, 1
      %p142 = por %p140, %p141
      %p143 = scmp.ne.s32.totalorder %s134, %s135
      %p144 = scmp.eq.s32.totalorder %s35, 0
      %p145 = por %p143, %p144
      %p146 = scmp.ne.s32.totalorder %s134, %s135
      %p147 = scmp.eq.s32.totalorder %s36, 1
      %p148 = por %p146, %p147
      %p150 = scmp.ne.s32.totalorder %s135, %s149
      %p151 = scmp.eq.s32.totalorder %s36, 0
      %p152 = por %p150, %p151
      %s154 = sadd.s32 %s153, 1
      %p157 = scmp.eq.s32.totalorder %s30, 1
      %p158 = scmp.ne.s32.totalorder %s153, %s155
      %p159 = scmp.eq.s32.totalorder %s30, 0
      %p160 = por %p158, %p159
      %p161 = scmp.ne.s32.totalorder %s153, %s155
      %p162 = scmp.eq.s32.totalorder %s35, 1
      %p163 = por %p161, %p162
      %p164 = scmp.ne.s32.totalorder %s155, %s156
      %p165 = scmp.eq.s32.totalorder %s35, 0
      %p166 = por %p164, %p165
      %p167 = scmp.ne.s32.totalorder %s155, %s156
      %p168 = scmp.eq.s32.totalorder %s36, 1
      %p169 = por %p167, %p168
      %p171 = scmp.ne.s32.totalorder %s156, %s170
      %p172 = scmp.eq.s32.totalorder %s36, 0
      %p173 = por %p171, %p172
      %s175 = sadd.s32 %s174, 1
      %p178 = scmp.eq.s32.totalorder %s30, 1
      %p179 = scmp.ne.s32.totalorder %s174, %s176
      %p180 = scmp.eq.s32.totalorder %s30, 0
      %p181 = por %p179, %p180
      %p182 = scmp.ne.s32.totalorder %s174, %s176
      %p183 = scmp.eq.s32.totalorder %s35, 1
      %p184 = por %p182, %p183
      %p185 = scmp.ne.s32.totalorder %s176, %s177
      %p186 = scmp.eq.s32.totalorder %s35, 0
      %p187 = por %p185, %p186
      %p188 = scmp.ne.s32.totalorder %s176, %s177
      %p189 = scmp.eq.s32.totalorder %s36, 1
      %p190 = por %p188, %p189
      %p192 = scmp.ne.s32.totalorder %s177, %s191
      %p193 = scmp.eq.s32.totalorder %s36, 0
      %p194 = por %p192, %p193
      %s195 = ssub.s32 %s30, %s37
      %p196 = scmp.eq.s32.totalorder %s195, 0
      %s198 = sadd.s32 %s197, 1
      %s199 = scalar_select %p196, %s197, %s198
      %p202 = pneg %p196
      %p203 = scmp.eq.s32.totalorder %s30, 1
      %p204 = por %p202, %p203
      %p205 = scmp.ne.s32.totalorder %s197, %s200
      %p206 = scmp.eq.s32.totalorder %s30, 0
      %p207 = por %p205, %p206
      %p208 = scmp.ne.s32.totalorder %s197, %s200
      %p209 = scmp.eq.s32.totalorder %s35, 1
      %p210 = por %p208, %p209
      %p211 = scmp.ne.s32.totalorder %s200, %s201
      %p212 = scmp.eq.s32.totalorder %s35, 0
      %p213 = por %p211, %p212
      %p214 = scmp.ne.s32.totalorder %s200, %s201
      %p215 = scmp.eq.s32.totalorder %s36, 1
      %p216 = por %p214, %p215
      %p218 = scmp.ne.s32.totalorder %s201, %s217
      %p219 = scmp.eq.s32.totalorder %s36, 0
      %p220 = por %p218, %p219
      %s221 = ssub.s32 %s30, %s37
      %p222 = scmp.eq.s32.totalorder %s221, 0
      %s224 = sadd.s32 %s223, 1
      %s225 = scalar_select %p222, %s223, %s224
      %p228 = pneg %p222
      %p229 = scmp.eq.s32.totalorder %s30, 1
      %p230 = por %p228, %p229
      %p231 = scmp.ne.s32.totalorder %s223, %s226
      %p232 = scmp.eq.s32.totalorder %s30, 0
      %p233 = por %p231, %p232
      %p234 = scmp.ne.s32.totalorder %s223, %s226
      %p235 = scmp.eq.s32.totalorder %s35, 1
      %p236 = por %p234, %p235
      %p237 = scmp.ne.s32.totalorder %s226, %s227
      %p238 = scmp.eq.s32.totalorder %s35, 0
      %p239 = por %p237, %p238
      %p240 = scmp.ne.s32.totalorder %s226, %s227
      %p241 = scmp.eq.s32.totalorder %s36, 1
      %p242 = por %p240, %p241
      %p244 = scmp.ne.s32.totalorder %s227, %s243
      %p245 = scmp.eq.s32.totalorder %s36, 0
      %p246 = por %p244, %p245
      %s247 = ssub.s32 %s30, %s37
      %p248 = scmp.eq.s32.totalorder %s247, 0
      %s250 = sadd.s32 %s249, 1
      %s251 = scalar_select %p248, %s249, %s250
      %p254 = pneg %p248
      %p255 = scmp.eq.s32.totalorder %s30, 1
      %p256 = por %p254, %p255
      %p257 = scmp.ne.s32.totalorder %s249, %s252
      %p258 = scmp.eq.s32.totalorder %s30, 0
      %p259 = por %p257, %p258
      %p260 = scmp.ne.s32.totalorder %s249, %s252
      %p261 = scmp.eq.s32.totalorder %s35, 1
      %p262 = por %p260, %p261
      %p263 = scmp.ne.s32.totalorder %s252, %s253
      %p264 = scmp.eq.s32.totalorder %s35, 0
      %p265 = por %p263, %p264
      %p266 = scmp.ne.s32.totalorder %s252, %s253
      %p267 = scmp.eq.s32.totalorder %s36, 1
      %p268 = por %p266, %p267
      %p270 = scmp.ne.s32.totalorder %s253, %s269
      %p271 = scmp.eq.s32.totalorder %s36, 0
      %p272 = por %p270, %p271
      %p273 = scmp.le.s32.totalorder 1, %s30
      %p274 = scmp.lt.s32.totalorder %s30, 3
      %p275 = pnand %p273, %p274
      %p276 = pneg %p275
      // Predicated region
      $region9: #{tpu_custom_call.1} parent=5 // pred_check
        _
      $region10: #{tpu_custom_call.1} parent=5 // pred_check_branch
        %278 = sbr.rel (%p275) target = $region12
      $region11: #{tpu_custom_call.1} parent=5 // pred_region
        %s279 = ssub.s32 %s30, 1
        // Predicated region
        $region13: #{tpu_custom_call.1} parent=11 // pred_check
          %p280 = pneg %p103
        $region14: #{tpu_custom_call.1} parent=11 // pred_check_branch
          %282 = sbr.rel (%p280) target = $region16
        $region15: #{tpu_custom_call.1} parent=11 // pred_region
          %284 = vsyncadd [#allocation7], 0
          %s285 = sshll.u32 %s2, 4
          %s286 = int_to_ptr.hbm [resolvable:$true] %s285
          %s287 = sshll.u32 [#allocation8], 4
          %s288 = int_to_ptr.vmem [resolvable:$true] %s287
          %293 = dma.hbm_to_vmem [thread:$0]  %s286, 16384, %s288, [#allocation7], 256, 256, 16
        $region16: #{tpu_custom_call.1} parent=11 // pred_fallthru
          _
        // Predicated region
        $region17: #{tpu_custom_call.1} parent=11 // pred_check
          %p294 = pneg %p124
        $region18: #{tpu_custom_call.1} parent=11 // pred_check_branch
          %296 = sbr.rel (%p294) target = $region20
        $region19: #{tpu_custom_call.1} parent=11 // pred_region
          _
        $region20: #{tpu_custom_call.1} parent=11 // pred_fallthru
          _
        // Predicated region
        $region21: #{tpu_custom_call.1} parent=11 // pred_check
          %p297 = pneg %p145
        $region22: #{tpu_custom_call.1} parent=11 // pred_check_branch
          %299 = sbr.rel (%p297) target = $region24
        $region23: #{tpu_custom_call.1} parent=11 // pred_region
          _
        $region24: #{tpu_custom_call.1} parent=11 // pred_fallthru
          _
        // Predicated region
        $region25: #{tpu_custom_call.1} parent=11 // pred_check
          %p300 = pneg %p166
        $region26: #{tpu_custom_call.1} parent=11 // pred_check_branch
          %302 = sbr.rel (%p300) target = $region28
        $region27: #{tpu_custom_call.1} parent=11 // pred_region
          _
        $region28: #{tpu_custom_call.1} parent=11 // pred_fallthru
          _
        // Predicated region
        $region29: #{tpu_custom_call.1} parent=11 // pred_check
          %p303 = pneg %p187
        $region30: #{tpu_custom_call.1} parent=11 // pred_check_branch
          %305 = sbr.rel (%p303) target = $region32
        $region31: #{tpu_custom_call.1} parent=11 // pred_region
          _
        $region32: #{tpu_custom_call.1} parent=11 // pred_fallthru
          _
      $region12: #{tpu_custom_call.1} parent=5 // pred_fallthru
        _
      %p306 = scmp.lt.s32.totalorder %s30, 2
      // Predicated region
      $region33: #{tpu_custom_call.1} parent=5 // pred_check
        %p307 = pneg %p306
      $region34: #{tpu_custom_call.1} parent=5 // pred_check_branch
        %309 = sbr.rel (%p307) target = $region36
      $region35: #{tpu_custom_call.1} parent=5 // pred_region
        // Predicated region
        $region37: #{tpu_custom_call.1} parent=35 // pred_check
          %p310 = pneg %p50
        $region38: #{tpu_custom_call.1} parent=35 // pred_check_branch
          %312 = sbr.rel (%p310) target = $region40
        $region39: #{tpu_custom_call.1} parent=35 // pred_region
          %s313 = sand.u32 %s40, 1
          %s314 = scalar_lea.sflag [#allocation4], %s313
          %s315 = sand.u32 %s40, 1
          %s316 = smul.addr %s315, 32
          %s317 = scalar_lea.vmem [#allocation3], %s316
          %319 = vsyncadd %s314, 0
          %s320 = smul.addr %s30, 4
          %s321 = smul.addr %s320, 8
          %s322 = scalar_lea.hbm %s0, %s321
          %s324 = sshll.u32 %s322, 4
          %s325 = int_to_ptr.hbm [resolvable:$true] %s324
          %s326 = sshll.u32 %s317, 4
          %s327 = int_to_ptr.vmem [resolvable:$true] %s326
          %329 = dma.hbm_to_vmem [thread:$0]  %s325, 512, %s327, %s314
        $region40: #{tpu_custom_call.1} parent=35 // pred_fallthru
          _
        // Predicated region
        $region41: #{tpu_custom_call.1} parent=35 // pred_check
          %p330 = pneg %p76
        $region42: #{tpu_custom_call.1} parent=35 // pred_check_branch
          %332 = sbr.rel (%p330) target = $region44
        $region43: #{tpu_custom_call.1} parent=35 // pred_region
          %s333 = sand.u32 %s30, 1
          %s334 = scalar_lea.sflag [#allocation7], %s333
          %s335 = sand.u32 %s66, 1
          %s336 = smul.addr %s335, 32
          %s337 = scalar_lea.vmem [#allocation6], %s336
          %339 = vsyncadd %s334, 0
          %s340 = smul.addr %s30, 4
          %s341 = smul.addr %s340, 8
          %s342 = scalar_lea.hbm %s1, %s341
          %s344 = sshll.u32 %s342, 4
          %s345 = int_to_ptr.hbm [resolvable:$true] %s344
          %s346 = sshll.u32 %s337, 4
          %s347 = int_to_ptr.vmem [resolvable:$true] %s346
          %349 = dma.hbm_to_vmem [thread:$0]  %s345, 512, %s347, %s334
        $region44: #{tpu_custom_call.1} parent=35 // pred_fallthru
          _
      $region36: #{tpu_custom_call.1} parent=5 // pred_fallthru
        _
      %p350 = scmp.le.s32.totalorder 1, %s30
      %p351 = scmp.lt.s32.totalorder %s30, 3
      %p352 = pnand %p350, %p351
      %p353 = pneg %p352
      // Predicated region
      $region45: #{tpu_custom_call.1} parent=5 // pred_check
        _
      $region46: #{tpu_custom_call.1} parent=5 // pred_check_branch
        %355 = sbr.rel (%p352) target = $region48
      $region47: #{tpu_custom_call.1} parent=5 // pred_region
        %s356 = ssub.s32 %s30, 1
        %s357 = sand.u32 %s43, 1
        %s358 = scalar_lea.sflag [#allocation4], %s357
        %s359 = sand.u32 %s43, 1
        %s360 = smul.addr %s359, 32
        %s361 = scalar_lea.vmem [#allocation3], %s360
        // Predicated region
        $region49: #{tpu_custom_call.1} parent=47 // pred_check
          %p362 = pneg %p56
        $region50: #{tpu_custom_call.1} parent=47 // pred_check_branch
          %364 = sbr.rel (%p362) target = $region52
        $region51: #{tpu_custom_call.1} parent=47 // pred_region
          %366 = dma.done %s358, 512
        $region52: #{tpu_custom_call.1} parent=47 // pred_fallthru
          _
        %s367 = sand.u32 %s35, 1
        %s368 = scalar_lea.sflag [#allocation7], %s367
        %s369 = sand.u32 %s69, 1
        %s370 = smul.addr %s369, 32
        %s371 = scalar_lea.vmem [#allocation6], %s370
        // Predicated region
        $region53: #{tpu_custom_call.1} parent=47 // pred_check
          %p372 = pneg %p82
        $region54: #{tpu_custom_call.1} parent=47 // pred_check_branch
          %374 = sbr.rel (%p372) target = $region56
        $region55: #{tpu_custom_call.1} parent=47 // pred_region
          %376 = dma.done %s368, 512
        $region56: #{tpu_custom_call.1} parent=47 // pred_fallthru
          _
        // Predicated region
        $region57: #{tpu_custom_call.1} parent=47 // pred_check
          %p377 = pneg %p103
        $region58: #{tpu_custom_call.1} parent=47 // pred_check_branch
          %379 = sbr.rel (%p377) target = $region60
        $region59: #{tpu_custom_call.1} parent=47 // pred_region
          %381 = dma.done [#allocation7], 16384
        $region60: #{tpu_custom_call.1} parent=47 // pred_fallthru
          _
        %s382 = sand.u32 %s43, 1
        %s383 = scalar_lea.sflag [#allocation4], %s382
        %s384 = sand.u32 %s43, 1
        %s385 = smul.addr %s384, 32
        %s386 = scalar_lea.vmem [#allocation3], %s385
        %p387 = pneg %p56
        %p388 = pneg %p53
        %s389 = sand.u32 %s35, 1
        %s390 = scalar_lea.sflag [#allocation7], %s389
        %s391 = sand.u32 %s69, 1
        %s392 = smul.addr %s391, 32
        %s393 = scalar_lea.vmem [#allocation6], %s392
        %p394 = pneg %p82
        %p395 = pneg %p79
        %p396 = pneg %p103
        %p397 = pneg %p100
        %p398 = pneg %p124
        %p399 = pneg %p121
        %p400 = pneg %p145
        %p401 = pneg %p142
        %p402 = pneg %p166
        %p403 = pneg %p163
        %p404 = pneg %p187
        %p405 = pneg %p184
        %p406 = pneg %p213
        %p407 = pneg %p210
        %s408 = sand.u32 %s200, 1
        %s409 = scalar_lea.sflag [#allocation5], %s408
        %s410 = sand.u32 %s200, 1
        %s411 = smul.addr %s410, 32
        %s412 = scalar_lea.vmem [#allocation9], %s411
        %p413 = pneg %p239
        %p414 = pneg %p236
        %s415 = sand.u32 %s226, 1
        %s416 = scalar_lea.sflag [#allocation11], %s415
        %s417 = sand.u32 %s226, 1
        %s418 = smul.addr %s417, 32
        %s419 = scalar_lea.vmem [#allocation10], %s418
        %p420 = pneg %p265
        %p421 = pneg %p262
        %p422 = scmp.lt.s32.totalorder %s35, 1
        %s423 = scalar_select %p422, %s35, 1
        %s424 = smul.addr %s423, 8
        %s425 = scalar_lea.vmem %s9, %s424
        %p426 = scmp.lt.s32.totalorder %s35, 1
        %s427 = scalar_select %p426, %s35, 1
        %s428 = smul.addr %s427, 8
        %s429 = scalar_lea.vmem %s9, %s428
        %v430 = vld [vmem:[%s361] sm:$0xff]
        %v431 = vld [vmem:[%s361 + $0x8] sm:$0xff]
        %v432 = vld [vmem:[%s361 + $0x10] sm:$0xff]
        %v433 = vld [vmem:[%s361 + $0x18] sm:$0xff]
        %v434 = vld [vmem:[%s371] sm:$0xff]
        %v435 = vld [vmem:[%s371 + $0x8] sm:$0xff]
        %v436 = vld [vmem:[%s371 + $0x10] sm:$0xff]
        %v437 = vld [vmem:[%s371 + $0x18] sm:$0xff]
        %v438 = vmul.f32 %v430, 1.025
        %v439 = vmul.f32 %v431, 1.025
        %v440 = vmul.f32 %v432, 1.025
        %v441 = vmul.f32 %v433, 1.025
        %442 = vst [vmem:[%s412] sm:$0xff] %v438
        %443 = vst [vmem:[%s412 + $0x8] sm:$0xff] %v439
        %444 = vst [vmem:[%s412 + $0x10] sm:$0xff] %v440
        %445 = vst [vmem:[%s412 + $0x18] sm:$0xff] %v441
        %v446 = vmul.f32 %v434, 1.025
        %v447 = vmul.f32 %v435, 1.025
        %v448 = vmul.f32 %v436, 1.025
        %v449 = vmul.f32 %v437, 1.025
        %450 = vst [vmem:[%s419] sm:$0xff] %v446
        %451 = vst [vmem:[%s419 + $0x8] sm:$0xff] %v447
        %452 = vst [vmem:[%s419 + $0x10] sm:$0xff] %v448
        %453 = vst [vmem:[%s419 + $0x18] sm:$0xff] %v449
        %v454 = vmul.f32 %v430, %v434
        %v455 = vmul.f32 %v431, %v435
        %v456 = vmul.f32 %v432, %v436
        %v457 = vmul.f32 %v433, %v437
        %v458 = vadd.f32 %v454, %v455
        %v459 = vadd.f32 %v458, %v456
        %v460 = vadd.f32 %v459, %v457
        %461 = vadd.xlane.f32.xlu0 %v460
        %v462 = vpop.xlane.xlu0 %461
        %v463 = vmul.f32 %v430, %v430
        %v464 = vmul.f32 %v431, %v431
        %v465 = vmul.f32 %v432, %v432
        %v466 = vmul.f32 %v433, %v433
        %v467 = vadd.f32 %v463, %v464
        %v468 = vadd.f32 %v467, %v465
        %v469 = vadd.f32 %v468, %v466
        %470 = vadd.xlane.f32.xlu0 %v469
        %v471 = vpop.xlane.xlu0 %470
        %v472 = vmul.f32 %v434, %v434
        %v473 = vmul.f32 %v435, %v435
        %v474 = vmul.f32 %v436, %v436
        %v475 = vmul.f32 %v437, %v437
        %v476 = vadd.f32 %v472, %v473
        %v477 = vadd.f32 %v476, %v474
        %v478 = vadd.f32 %v477, %v475
        %479 = vadd.xlane.f32.xlu0 %v478
        %v480 = vpop.xlane.xlu0 %479
        %v481 = vmax.f32 %v471, 1e-16
        %v482 = vmax.f32 %v480, 1e-16
        %v483 = vmul.f32 %v481, %v482
        %v484 = vrsqrt.pop %v483
        %v485 = vmul.f32 %v484, %v483
        %v486 = vmul.f32 %v485, %v484
        %v487 = vmul.f32 0.5, %v486
        %v488 = vsub.f32 1.5, %v487
        %v489 = vmul.f32 %v484, %v488
        %vm490 = vweird.f32 %v483
        %vm491 = vweird.f32 %v484
        %vm492 = vmor %vm490, %vm491
        %v493 = vsel %vm492, %v484, %v489
        %v494 = vmul.f32 %v462, %v493
        %v495 = vmul.f32 %v494, 14.285714
        %v496 = vld [vmem:[%s6] sm:$0x1]
        %v498 = vperm.slane %v496, 0
        %v500 = vmul.f32 %v498, %v495
        %v501 = vadd.f32 %v430, %v434
        %v502 = vadd.f32 %v431, %v435
        %v503 = vadd.f32 %v432, %v436
        %v504 = vadd.f32 %v433, %v437
        %v505 = vld [vmem:[#allocation8] sm:$0xff]
        %v506 = vld [vmem:[#allocation8 + $0x8] sm:$0xff]
        %v507 = vld [vmem:[#allocation8 + $0x10] sm:$0xff]
        %v508 = vld [vmem:[#allocation8 + $0x18] sm:$0xff]
        %v509 = vld [vmem:[#allocation8 + $0x20] sm:$0xff]
        %v510 = vld [vmem:[#allocation8 + $0x28] sm:$0xff]
        %v511 = vld [vmem:[#allocation8 + $0x30] sm:$0xff]
        %v512 = vld [vmem:[#allocation8 + $0x38] sm:$0xff]
        %v513 = vld [vmem:[#allocation8 + $0x40] sm:$0xff]
        %v514 = vld [vmem:[#allocation8 + $0x48] sm:$0xff]
        %v515 = vld [vmem:[#allocation8 + $0x50] sm:$0xff]
        %v516 = vld [vmem:[#allocation8 + $0x58] sm:$0xff]
        %v517 = vld [vmem:[#allocation8 + $0x60] sm:$0xff]
        %v518 = vld [vmem:[#allocation8 + $0x68] sm:$0xff]
        %v519 = vld [vmem:[#allocation8 + $0x70] sm:$0xff]
        %v520 = vld [vmem:[#allocation8 + $0x78] sm:$0xff]
        %v521 = vld [vmem:[#allocation8 + $0x80] sm:$0xff]
        %v522 = vld [vmem:[#allocation8 + $0x88] sm:$0xff]
        %v523 = vld [vmem:[#allocation8 + $0x90] sm:$0xff]
        %v524 = vld [vmem:[#allocation8 + $0x98] sm:$0xff]
        %v525 = vld [vmem:[#allocation8 + $0xa0] sm:$0xff]
        %v526 = vld [vmem:[#allocation8 + $0xa8] sm:$0xff]
        %v527 = vld [vmem:[#allocation8 + $0xb0] sm:$0xff]
        %v528 = vld [vmem:[#allocation8 + $0xb8] sm:$0xff]
        %v529 = vld [vmem:[#allocation8 + $0xc0] sm:$0xff]
        %v530 = vld [vmem:[#allocation8 + $0xc8] sm:$0xff]
        %v531 = vld [vmem:[#allocation8 + $0xd0] sm:$0xff]
        %v532 = vld [vmem:[#allocation8 + $0xd8] sm:$0xff]
        %v533 = vld [vmem:[#allocation8 + $0xe0] sm:$0xff]
        %v534 = vld [vmem:[#allocation8 + $0xe8] sm:$0xff]
        %v535 = vld [vmem:[#allocation8 + $0xf0] sm:$0xff]
        %v536 = vld [vmem:[#allocation8 + $0xf8] sm:$0xff]
        %v537 = vld [vmem:[#allocation8 + $0x100] sm:$0xff]
        %v538 = vld [vmem:[#allocation8 + $0x108] sm:$0xff]
        %v539 = vld [vmem:[#allocation8 + $0x110] sm:$0xff]
        %v540 = vld [vmem:[#allocation8 + $0x118] sm:$0xff]
        %v541 = vld [vmem:[#allocation8 + $0x120] sm:$0xff]
        %v542 = vld [vmem:[#allocation8 + $0x128] sm:$0xff]
        %v543 = vld [vmem:[#allocation8 + $0x130] sm:$0xff]
        %v544 = vld [vmem:[#allocation8 + $0x138] sm:$0xff]
        %v545 = vld [vmem:[#allocation8 + $0x140] sm:$0xff]
        %v546 = vld [vmem:[#allocation8 + $0x148] sm:$0xff]
        %v547 = vld [vmem:[#allocation8 + $0x150] sm:$0xff]
        %v548 = vld [vmem:[#allocation8 + $0x158] sm:$0xff]
        %v549 = vld [vmem:[#allocation8 + $0x160] sm:$0xff]
        %v550 = vld [vmem:[#allocation8 + $0x168] sm:$0xff]
        %v551 = vld [vmem:[#allocation8 + $0x170] sm:$0xff]
        %v552 = vld [vmem:[#allocation8 + $0x178] sm:$0xff]
        %v553 = vld [vmem:[#allocation8 + $0x180] sm:$0xff]
        %v554 = vld [vmem:[#allocation8 + $0x188] sm:$0xff]
        %v555 = vld [vmem:[#allocation8 + $0x190] sm:$0xff]
        %v556 = vld [vmem:[#allocation8 + $0x198] sm:$0xff]
        %v557 = vld [vmem:[#allocation8 + $0x1a0] sm:$0xff]
        %v558 = vld [vmem:[#allocation8 + $0x1a8] sm:$0xff]
        %v559 = vld [vmem:[#allocation8 + $0x1b0] sm:$0xff]
        %v560 = vld [vmem:[#allocation8 + $0x1b8] sm:$0xff]
        %v561 = vld [vmem:[#allocation8 + $0x1c0] sm:$0xff]
        %v562 = vld [vmem:[#allocation8 + $0x1c8] sm:$0xff]
        %v563 = vld [vmem:[#allocation8 + $0x1d0] sm:$0xff]
        %v564 = vld [vmem:[#allocation8 + $0x1d8] sm:$0xff]
        %v565 = vld [vmem:[#allocation8 + $0x1e0] sm:$0xff]
        %v566 = vld [vmem:[#allocation8 + $0x1e8] sm:$0xff]
        %v567 = vld [vmem:[#allocation8 + $0x1f0] sm:$0xff]
        %v568 = vld [vmem:[#allocation8 + $0x1f8] sm:$0xff]
        %v569 = vld [vmem:[#allocation8 + $0x200] sm:$0xff]
        %v570 = vld [vmem:[#allocation8 + $0x208] sm:$0xff]
        %v571 = vld [vmem:[#allocation8 + $0x210] sm:$0xff]
        %v572 = vld [vmem:[#allocation8 + $0x218] sm:$0xff]
        %v573 = vld [vmem:[#allocation8 + $0x220] sm:$0xff]
        %v574 = vld [vmem:[#allocation8 + $0x228] sm:$0xff]
        %v575 = vld [vmem:[#allocation8 + $0x230] sm:$0xff]
        %v576 = vld [vmem:[#allocation8 + $0x238] sm:$0xff]
        %v577 = vld [vmem:[#allocation8 + $0x240] sm:$0xff]
        %v578 = vld [vmem:[#allocation8 + $0x248] sm:$0xff]
        %v579 = vld [vmem:[#allocation8 + $0x250] sm:$0xff]
        %v580 = vld [vmem:[#allocation8 + $0x258] sm:$0xff]
        %v581 = vld [vmem:[#allocation8 + $0x260] sm:$0xff]
        %v582 = vld [vmem:[#allocation8 + $0x268] sm:$0xff]
        %v583 = vld [vmem:[#allocation8 + $0x270] sm:$0xff]
        %v584 = vld [vmem:[#allocation8 + $0x278] sm:$0xff]
        %v585 = vld [vmem:[#allocation8 + $0x280] sm:$0xff]
        %v586 = vld [vmem:[#allocation8 + $0x288] sm:$0xff]
        %v587 = vld [vmem:[#allocation8 + $0x290] sm:$0xff]
        %v588 = vld [vmem:[#allocation8 + $0x298] sm:$0xff]
        %v589 = vld [vmem:[#allocation8 + $0x2a0] sm:$0xff]
        %v590 = vld [vmem:[#allocation8 + $0x2a8] sm:$0xff]
        %v591 = vld [vmem:[#allocation8 + $0x2b0] sm:$0xff]
        %v592 = vld [vmem:[#allocation8 + $0x2b8] sm:$0xff]
        %v593 = vld [vmem:[#allocation8 + $0x2c0] sm:$0xff]
        %v594 = vld [vmem:[#allocation8 + $0x2c8] sm:$0xff]
        %v595 = vld [vmem:[#allocation8 + $0x2d0] sm:$0xff]
        %v596 = vld [vmem:[#allocation8 + $0x2d8] sm:$0xff]
        %v597 = vld [vmem:[#allocation8 + $0x2e0] sm:$0xff]
        %v598 = vld [vmem:[#allocation8 + $0x2e8] sm:$0xff]
        %v599 = vld [vmem:[#allocation8 + $0x2f0] sm:$0xff]
        %v600 = vld [vmem:[#allocation8 + $0x2f8] sm:$0xff]
        %v601 = vld [vmem:[#allocation8 + $0x300] sm:$0xff]
        %v602 = vld [vmem:[#allocation8 + $0x308] sm:$0xff]
        %v603 = vld [vmem:[#allocation8 + $0x310] sm:$0xff]
        %v604 = vld [vmem:[#allocation8 + $0x318] sm:$0xff]
        %v605 = vld [vmem:[#allocation8 + $0x320] sm:$0xff]
        %v606 = vld [vmem:[#allocation8 + $0x328] sm:$0xff]
        %v607 = vld [vmem:[#allocation8 + $0x330] sm:$0xff]
        %v608 = vld [vmem:[#allocation8 + $0x338] sm:$0xff]
        %v609 = vld [vmem:[#allocation8 + $0x340] sm:$0xff]
        %v610 = vld [vmem:[#allocation8 + $0x348] sm:$0xff]
        %v611 = vld [vmem:[#allocation8 + $0x350] sm:$0xff]
        %v612 = vld [vmem:[#allocation8 + $0x358] sm:$0xff]
        %v613 = vld [vmem:[#allocation8 + $0x360] sm:$0xff]
        %v614 = vld [vmem:[#allocation8 + $0x368] sm:$0xff]
        %v615 = vld [vmem:[#allocation8 + $0x370] sm:$0xff]
        %v616 = vld [vmem:[#allocation8 + $0x378] sm:$0xff]
        %v617 = vld [vmem:[#allocation8 + $0x380] sm:$0xff]
        %v618 = vld [vmem:[#allocation8 + $0x388] sm:$0xff]
        %v619 = vld [vmem:[#allocation8 + $0x390] sm:$0xff]
        %v620 = vld [vmem:[#allocation8 + $0x398] sm:$0xff]
        %v621 = vld [vmem:[#allocation8 + $0x3a0] sm:$0xff]
        %v622 = vld [vmem:[#allocation8 + $0x3a8] sm:$0xff]
        %v623 = vld [vmem:[#allocation8 + $0x3b0] sm:$0xff]
        %v624 = vld [vmem:[#allocation8 + $0x3b8] sm:$0xff]
        %v625 = vld [vmem:[#allocation8 + $0x3c0] sm:$0xff]
        %v626 = vld [vmem:[#allocation8 + $0x3c8] sm:$0xff]
        %v627 = vld [vmem:[#allocation8 + $0x3d0] sm:$0xff]
        %v628 = vld [vmem:[#allocation8 + $0x3d8] sm:$0xff]
        %v629 = vld [vmem:[#allocation8 + $0x3e0] sm:$0xff]
        %v630 = vld [vmem:[#allocation8 + $0x3e8] sm:$0xff]
        %v631 = vld [vmem:[#allocation8 + $0x3f0] sm:$0xff]
        %v632 = vld [vmem:[#allocation8 + $0x3f8] sm:$0xff]
        %v633 = vld [vmem:[%s3] sm:$0x3]
        %v635 = vperm.slane %v633, 0
        %v636 = vperm.slane %v633, 1
        %639 = vmatpush.msra.mxu0 %v535
        %640 = vmatpush.msra.mxu0 %v533
        %641 = vmatpush.msra.mxu0 %v531
        %642 = vmatpush.msra.mxu0 %v529
        %643 = vmatpush.msra.mxu0 %v527
        %644 = vmatpush.msra.mxu0 %v525
        %645 = vmatpush.msra.mxu0 %v523
        %646 = vmatpush.msra.mxu0 %v521
        %647 = vmatpush.msra.mxu0 %v519
        %648 = vmatpush.msra.mxu0 %v517
        %649 = vmatpush.msra.mxu0 %v515
        %650 = vmatpush.msra.mxu0 %v513
        %651 = vmatpush.msra.mxu0 %v511
        %652 = vmatpush.msra.mxu0 %v509
        %653 = vmatpush.msra.mxu0 %v507
        %654 = vmatpush.msra.mxu0 %v505
        %655 = vmatmul.f32.gmra.mxu0 %v501
        %v656 = vpop.f32.mrf.mxu0
        %v657 = vadd.f32 %v635, %v656
        %658 = vdwg.mxu0
        %659 = vmatpush.msra.mxu0 %v567
        %660 = vmatpush.msra.mxu0 %v565
        %661 = vmatpush.msra.mxu0 %v563
        %662 = vmatpush.msra.mxu0 %v561
        %663 = vmatpush.msra.mxu0 %v559
        %664 = vmatpush.msra.mxu0 %v557
        %665 = vmatpush.msra.mxu0 %v555
        %666 = vmatpush.msra.mxu0 %v553
        %667 = vmatpush.msra.mxu0 %v551
        %668 = vmatpush.msra.mxu0 %v549
        %669 = vmatpush.msra.mxu0 %v547
        %670 = vmatpush.msra.mxu0 %v545
        %671 = vmatpush.msra.mxu0 %v543
        %672 = vmatpush.msra.mxu0 %v541
        %673 = vmatpush.msra.mxu0 %v539
        %674 = vmatpush.msra.mxu0 %v537
        %675 = vmatmul.f32.gmra.mxu0 %v502
        %v676 = vpop.f32.mrf.mxu0
        %v677 = vadd.f32 %v657, %v676
        %678 = vdwg.mxu0
        %679 = vmatpush.msra.mxu0 %v599
        %680 = vmatpush.msra.mxu0 %v597
        %681 = vmatpush.msra.mxu0 %v595
        %682 = vmatpush.msra.mxu0 %v593
        %683 = vmatpush.msra.mxu0 %v591
        %684 = vmatpush.msra.mxu0 %v589
        %685 = vmatpush.msra.mxu0 %v587
        %686 = vmatpush.msra.mxu0 %v585
        %687 = vmatpush.msra.mxu0 %v583
        %688 = vmatpush.msra.mxu0 %v581
        %689 = vmatpush.msra.mxu0 %v579
        %690 = vmatpush.msra.mxu0 %v577
        %691 = vmatpush.msra.mxu0 %v575
        %692 = vmatpush.msra.mxu0 %v573
        %693 = vmatpush.msra.mxu0 %v571
        %694 = vmatpush.msra.mxu0 %v569
        %695 = vmatmul.f32.gmra.mxu0 %v503
        %v696 = vpop.f32.mrf.mxu0
        %v697 = vadd.f32 %v677, %v696
        %698 = vdwg.mxu0
        %699 = vmatpush.msra.mxu0 %v631
        %700 = vmatpush.msra.mxu0 %v629
        %701 = vmatpush.msra.mxu0 %v627
        %702 = vmatpush.msra.mxu0 %v625
        %703 = vmatpush.msra.mxu0 %v623
        %704 = vmatpush.msra.mxu0 %v621
        %705 = vmatpush.msra.mxu0 %v619
        %706 = vmatpush.msra.mxu0 %v617
        %707 = vmatpush.msra.mxu0 %v615
        %708 = vmatpush.msra.mxu0 %v613
        %709 = vmatpush.msra.mxu0 %v611
        %710 = vmatpush.msra.mxu0 %v609
        %711 = vmatpush.msra.mxu0 %v607
        %712 = vmatpush.msra.mxu0 %v605
        %713 = vmatpush.msra.mxu0 %v603
        %714 = vmatpush.msra.mxu0 %v601
        %715 = vmatmul.f32.gmra.mxu0 %v504
        %v716 = vpop.f32.mrf.mxu0
        %v717 = vadd.f32 %v697, %v716
        %718 = vdwg.mxu0
        %719 = vmatpush.msra.mxu0 %v536
        %720 = vmatpush.msra.mxu0 %v534
        %721 = vmatpush.msra.mxu0 %v532
        %722 = vmatpush.msra.mxu0 %v530
        %723 = vmatpush.msra.mxu0 %v528
        %724 = vmatpush.msra.mxu0 %v526
        %725 = vmatpush.msra.mxu0 %v524
        %726 = vmatpush.msra.mxu0 %v522
        %727 = vmatpush.msra.mxu0 %v520
        %728 = vmatpush.msra.mxu0 %v518
        %729 = vmatpush.msra.mxu0 %v516
        %730 = vmatpush.msra.mxu0 %v514
        %731 = vmatpush.msra.mxu0 %v512
        %732 = vmatpush.msra.mxu0 %v510
        %733 = vmatpush.msra.mxu0 %v508
        %734 = vmatpush.msra.mxu0 %v506
        %735 = vmatmul.f32.gmra.mxu0 %v501
        %v736 = vpop.f32.mrf.mxu0
        %v737 = vadd.f32 %v636, %v736
        %738 = vdwg.mxu0
        %739 = vmatpush.msra.mxu0 %v568
        %740 = vmatpush.msra.mxu0 %v566
        %741 = vmatpush.msra.mxu0 %v564
        %742 = vmatpush.msra.mxu0 %v562
        %743 = vmatpush.msra.mxu0 %v560
        %744 = vmatpush.msra.mxu0 %v558
        %745 = vmatpush.msra.mxu0 %v556
        %746 = vmatpush.msra.mxu0 %v554
        %747 = vmatpush.msra.mxu0 %v552
        %748 = vmatpush.msra.mxu0 %v550
        %749 = vmatpush.msra.mxu0 %v548
        %750 = vmatpush.msra.mxu0 %v546
        %751 = vmatpush.msra.mxu0 %v544
        %752 = vmatpush.msra.mxu0 %v542
        %753 = vmatpush.msra.mxu0 %v540
        %754 = vmatpush.msra.mxu0 %v538
        %755 = vmatmul.f32.gmra.mxu0 %v502
        %v756 = vpop.f32.mrf.mxu0
        %v757 = vadd.f32 %v737, %v756
        %758 = vdwg.mxu0
        %759 = vmatpush.msra.mxu0 %v600
        %760 = vmatpush.msra.mxu0 %v598
        %761 = vmatpush.msra.mxu0 %v596
        %762 = vmatpush.msra.mxu0 %v594
        %763 = vmatpush.msra.mxu0 %v592
        %764 = vmatpush.msra.mxu0 %v590
        %765 = vmatpush.msra.mxu0 %v588
        %766 = vmatpush.msra.mxu0 %v586
        %767 = vmatpush.msra.mxu0 %v584
        %768 = vmatpush.msra.mxu0 %v582
        %769 = vmatpush.msra.mxu0 %v580
        %770 = vmatpush.msra.mxu0 %v578
        %771 = vmatpush.msra.mxu0 %v576
        %772 = vmatpush.msra.mxu0 %v574
        %773 = vmatpush.msra.mxu0 %v572
        %774 = vmatpush.msra.mxu0 %v570
        %775 = vmatmul.f32.gmra.mxu0 %v503
        %v776 = vpop.f32.mrf.mxu0
        %v777 = vadd.f32 %v757, %v776
        %778 = vdwg.mxu0
        %779 = vmatpush.msra.mxu0 %v632
        %780 = vmatpush.msra.mxu0 %v630
        %781 = vmatpush.msra.mxu0 %v628
        %782 = vmatpush.msra.mxu0 %v626
        %783 = vmatpush.msra.mxu0 %v624
        %784 = vmatpush.msra.mxu0 %v622
        %785 = vmatpush.msra.mxu0 %v620
        %786 = vmatpush.msra.mxu0 %v618
        %787 = vmatpush.msra.mxu0 %v616
        %788 = vmatpush.msra.mxu0 %v614
        %789 = vmatpush.msra.mxu0 %v612
        %790 = vmatpush.msra.mxu0 %v610
        %791 = vmatpush.msra.mxu0 %v608
        %792 = vmatpush.msra.mxu0 %v606
        %793 = vmatpush.msra.mxu0 %v604
        %794 = vmatpush.msra.mxu0 %v602
        %795 = vmatmul.f32.gmra.mxu0 %v504
        %v796 = vpop.f32.mrf.mxu0
        %v797 = vadd.f32 %v777, %v796
        %798 = vdwg.mxu0
        %v799 = vmax.f32 %v717, 0.0
        %v800 = vmax.f32 %v797, 0.0
        %v801 = vld [vmem:[%s4] sm:$0x3]
        %v803 = vperm.slane %v801, 0
        %v804 = vperm.slane %v801, 1
        %v807 = vmul.f32 %v799, %v803
        %v808 = vmul.f32 %v800, %v804
        %v809 = vadd.f32 %v807, %v808
        %810 = vadd.xlane.f32.xlu0 %v809
        %v811 = vpop.xlane.xlu0 %810
        %v812 = vld [vmem:[#allocation2] sm:$0x1]
        %v814 = vperm.slane %v812, 0
        %v816 = vadd.f32 %v811, %v814
        %v817 = vmul.f32 %v816, 0.5
        %v818 = vtanh.pop %v817
        %v819 = vadd.f32 %v818, 1.0
        %v820 = vmul.f32 %v819, 0.5
        %v821 = vsub.f32 1.0, %v820
        %823 = vset.pattern.permute.xlu0 0
        %824 = vperm.xlu0 %823, %v821
        %v825 = vpop.permute.xlu0 %824
        %v827 = vmul.f32 %v500, %v825
        %vm828 = vcmask 31744
        %v829 = vsel %vm828, %v827, -inf
        %830 = vmax.xlane.f32.xlu0 %v829
        %v831 = vpop.xlane.xlu0 %830
        %v832 = vsub.f32 %v827, %v831
        %v833 = vmul.f32 %v832, 1.442695
        %v834 = vpow.pop %v833
        %v835 = vsel %vm828, %v834, 0.0
        %836 = vadd.xlane.f32.xlu0 %v835
        %v837 = vpop.xlane.xlu0 %836
        %v838 = vrcp.pop %v837
        %v839 = vmul.f32 %v837, %v838
        %v840 = vsub.f32 1.0, %v839
        %v841 = vmul.f32 %v838, %v840
        %v842 = vadd.f32 %v838, %v841
        %vm843 = vweird.f32 %v837
        %vm844 = vweird.f32 %v838
        %vm845 = vmor %vm843, %vm844
        %v846 = vsel %vm845, %v838, %v842
        %v847 = vand.u32 2147483647, %v837
        %vm848 = vcmp.eq.f32.partialorder %v847, 8.507059e+37
        %v849 = vand.u32 %v837, 2147483648
        %v850 = vor.u32 1.1754944e-38, %v849
        %v851 = vsel %vm848, %v850, %v846
        %v852 = vmul.f32 %v834, %v851
        %853 = vst.msk [vmem:[%s429] sm:$0xff] %vm828, %v852
        %s854 = sand.u32 %s200, 1
        %s855 = scalar_lea.sflag [#allocation5], %s854
        %s856 = sand.u32 %s200, 1
        %s857 = smul.addr %s856, 32
        %s858 = scalar_lea.vmem [#allocation9], %s857
        %s859 = sand.u32 %s226, 1
        %s860 = scalar_lea.sflag [#allocation11], %s859
        %s861 = sand.u32 %s226, 1
        %s862 = smul.addr %s861, 32
        %s863 = scalar_lea.vmem [#allocation10], %s862
        %p864 = scmp.lt.s32.totalorder %s35, 1
        %s865 = scalar_select %p864, %s35, 1
        %s866 = smul.addr %s865, 8
        %s867 = scalar_lea.vmem %s9, %s866
        // Predicated region
        $region61: #{tpu_custom_call.1} parent=47 // pred_check
          %p868 = pneg %p210
        $region62: #{tpu_custom_call.1} parent=47 // pred_check_branch
          %870 = sbr.rel (%p868) target = $region64
        $region63: #{tpu_custom_call.1} parent=47 // pred_region
          %872 = vsyncadd %s855, 0
          %s873 = smul.addr %s35, 4
          %s874 = smul.addr %s873, 8
          %s875 = scalar_lea.hbm %s7, %s874
          %s877 = sshll.u32 %s858, 4
          %s878 = int_to_ptr.vmem [resolvable:$true] %s877
          %s879 = sshll.u32 %s875, 4
          %s880 = int_to_ptr.hbm [resolvable:$true] %s879
          %882 = dma.vmem_to_hbm [thread:$0]  %s878, 512, %s880, %s855
        $region64: #{tpu_custom_call.1} parent=47 // pred_fallthru
          _
        // Predicated region
        $region65: #{tpu_custom_call.1} parent=47 // pred_check
          %p883 = pneg %p236
        $region66: #{tpu_custom_call.1} parent=47 // pred_check_branch
          %885 = sbr.rel (%p883) target = $region68
        $region67: #{tpu_custom_call.1} parent=47 // pred_region
          %887 = vsyncadd %s860, 0
          %s888 = smul.addr %s35, 4
          %s889 = smul.addr %s888, 8
          %s890 = scalar_lea.hbm %s8, %s889
          %s892 = sshll.u32 %s863, 4
          %s893 = int_to_ptr.vmem [resolvable:$true] %s892
          %s894 = sshll.u32 %s890, 4
          %s895 = int_to_ptr.hbm [resolvable:$true] %s894
          %897 = dma.vmem_to_hbm [thread:$0]  %s893, 512, %s895, %s860
        $region68: #{tpu_custom_call.1} parent=47 // pred_fallthru
          _
        // Predicated region
        $region69: #{tpu_custom_call.1} parent=47 // pred_check
          %p898 = pneg %p262
        $region70: #{tpu_custom_call.1} parent=47 // pred_check_branch
          %900 = sbr.rel (%p898) target = $region72
        $region71: #{tpu_custom_call.1} parent=47 // pred_region
          _
        $region72: #{tpu_custom_call.1} parent=47 // pred_fallthru
          _
      $region48: #{tpu_custom_call.1} parent=5 // pred_fallthru
        _
      %p901 = scmp.le.s32.totalorder 2, %s30
      // Predicated region
      $region73: #{tpu_custom_call.1} parent=5 // pred_check
        %p902 = pneg %p901
      $region74: #{tpu_custom_call.1} parent=5 // pred_check_branch
        %904 = sbr.rel (%p902) target = $region76
      $region75: #{tpu_custom_call.1} parent=5 // pred_region
        %s905 = ssub.s32 %s30, 2
        // Predicated region
        $region77: #{tpu_custom_call.1} parent=75 // pred_check
          %p906 = pneg %p216
        $region78: #{tpu_custom_call.1} parent=75 // pred_check_branch
          %908 = sbr.rel (%p906) target = $region80
        $region79: #{tpu_custom_call.1} parent=75 // pred_region
          %s909 = sand.u32 %s201, 1
          %s910 = scalar_lea.sflag [#allocation5], %s909
          %s911 = sand.u32 %s201, 1
          %s912 = smul.addr %s911, 32
          %s913 = scalar_lea.vmem [#allocation9], %s912
          %915 = dma.done %s910, 512
        $region80: #{tpu_custom_call.1} parent=75 // pred_fallthru
          _
        // Predicated region
        $region81: #{tpu_custom_call.1} parent=75 // pred_check
          %p916 = pneg %p242
        $region82: #{tpu_custom_call.1} parent=75 // pred_check_branch
          %918 = sbr.rel (%p916) target = $region84
        $region83: #{tpu_custom_call.1} parent=75 // pred_region
          %s919 = sand.u32 %s227, 1
          %s920 = scalar_lea.sflag [#allocation11], %s919
          %s921 = sand.u32 %s227, 1
          %s922 = smul.addr %s921, 32
          %s923 = scalar_lea.vmem [#allocation10], %s922
          %925 = dma.done %s920, 512
        $region84: #{tpu_custom_call.1} parent=75 // pred_fallthru
          _
        // Predicated region
        $region85: #{tpu_custom_call.1} parent=75 // pred_check
          %p926 = pneg %p268
        $region86: #{tpu_custom_call.1} parent=75 // pred_check_branch
          %928 = sbr.rel (%p926) target = $region88
        $region87: #{tpu_custom_call.1} parent=75 // pred_region
          %p929 = scmp.lt.s32.totalorder %s36, 1
          %s930 = scalar_select %p929, %s36, 1
          %s931 = smul.addr %s930, 8
          %s932 = scalar_lea.vmem %s9, %s931
        $region88: #{tpu_custom_call.1} parent=75 // pred_fallthru
          _
      $region76: #{tpu_custom_call.1} parent=5 // pred_fallthru
        _
    $region6: #{tpu_custom_call.1} parent=1 // loop_footer
      %s34 = sadd.s32 1, %s30
    $region7: #{tpu_custom_call.1} parent=1 // loop_footer_branch
      %29 = sbr.rel target = $region3
    $region8: #{tpu_custom_call.1} parent=1 // loop_exit
      _
    %933 = vsyncpa [#allocation4], 1
    %s934 = scalar_lea.sflag [#allocation4], 1
    %935 = vsyncpa %s934, 1
    %936 = vsyncpa [#allocation7], 1
    %s937 = scalar_lea.sflag [#allocation7], 1
    %938 = vsyncpa %s937, 1
    %939 = vsyncpa [#allocation5], 1
    %s940 = scalar_lea.sflag [#allocation5], 1
    %941 = vsyncpa %s940, 1
    %942 = vsyncpa [#allocation11], 1
    %s943 = scalar_lea.sflag [#allocation11], 1
    %944 = vsyncpa %s943, 1

</llo_original>
